<compile_context>
chip_gen: v7x
topology: tpu7x:2x2x1
jax: 0.10.0
libtpu: 0.0.40
codegen_flags: <defaults>
</compile_context>

<pallas_src>
import jax
import jax.numpy as jnp
from jax.experimental import pallas as pl
from jax.experimental.pallas import tpu as pltpu

_LANE = 128


# ---------------------------------------------------------------------------
# Kernels.
# ---------------------------------------------------------------------------
def _concat_store_kernel(*refs):
    """Per-segment stores. Used when every segment's output column offset is a
    multiple of 128 lanes -> every store (except possibly the final tail) is a
    full, unmasked vst sweep. Cast is free VPU filler under the DMAs."""
    *in_refs, out_ref = refs
    off = 0
    for r in in_refs:
        d = r.shape[1]
        out_ref[:, off:off + d] = r[...].astype(out_ref.dtype)
        off += d


def _concat_fused_kernel(*refs):
    """Single lane-dense writeback: build the whole (tb, D_total) tile with one
    in-kernel concat (XLU shuffles in an otherwise idle unit on this
    bandwidth-bound copy) so the store slot only sees unmasked stores even when
    segment offsets are not 128-lane aligned."""
    *in_refs, out_ref = refs
    out_ref[...] = jnp.concatenate(
        [r[...].astype(out_ref.dtype) for r in in_refs], axis=1)


# ---------------------------------------------------------------------------
# Wrapper helpers.
# ---------------------------------------------------------------------------
def _flatten_to_2d(v: jax.Array) -> jax.Array:
    """Mirror the PyTorch dim-handling exactly."""
    if v.ndim == 1:
        return v[:, None]
    elif v.ndim == 2:
        return v
    elif v.ndim > 2:
        return v.reshape(v.shape[0], -1)
    else:
        raise ValueError(f"Unsupported tensor shape: {v.shape}")


def _group_segments(flats, out_dtype, min_wide=_LANE):
    """Merge runs (len >= 2) of consecutive narrow segments with one small
    wrapper-side concat so the kernel sees fewer, wider segments.  Column order
    (and therefore torch.cat semantics) is preserved; wide segments are never
    re-copied wrapper-side (no extra HBM pass over bulk data)."""
    groups, run = [], []
    for f in flats:
        if f.shape[1] < min_wide:
            run.append(f)
        else:
            if run:
                groups.append(run)
                run = []
            groups.append([f])
    if run:
        groups.append(run)

    segs = []
    for g in groups:
        if len(g) == 1:
            segs.append(g[0])
        else:
            segs.append(jnp.concatenate([t.astype(out_dtype) for t in g], axis=1))
    return segs


def _pad_lanes(d: int) -> int:
    return -(-d // _LANE) * _LANE


def _vmem_params():
    """Generation-aware VMEM sizing.  budget ~ capacity/4 for the
    double-buffered in+out tiles; Mosaic scoped limit ~ 5/8 * capacity capped at
    96 MiB (v5e/v6e have 128 MiB, v7x only 64 MiB per TC); bigger per-step tiles
    on v7x to amortize the ~0.35 us grid-step overhead against 3.2 TB/s HBM."""
    cap = None
    try:
        cap = getattr(pltpu.get_tpu_info(), "vmem_capacity_bytes", None)
    except Exception:  # pragma: no cover - emulator / old runtime
        cap = None
    if not cap:
        cap = 64 * 1024 * 1024  # conservative default (v7x per-TC VMEM)
    budget = int(cap) // 4
    limit = int(min((int(cap) * 5) // 8, 96 * 1024 * 1024))
    max_rows = 2048 if cap <= 64 * 1024 * 1024 else 1024
    return budget, limit, max_rows


def _choose_batch_tile(B, segs, out_dtype, budget, max_rows):
    """Pick batch tile TB (multiple of the sublane packing, VMEM-budgeted,
    counting the real lane-padded footprint of every segment tile)."""
    itemsizes = [jnp.dtype(s.dtype).itemsize for s in segs]
    itemsizes.append(jnp.dtype(out_dtype).itemsize)
    sub = max(8, 32 // min(itemsizes))    # f32 -> 8, bf16 -> 16, int8 -> 32

    d_total = sum(s.shape[1] for s in segs)
    # A (tb, 1) f32 segment really occupies tb x 128 lanes of VMEM, so round
    # every width (and the output width) up to 128 lanes.
    bytes_per_row = (sum(_pad_lanes(s.shape[1]) * jnp.dtype(s.dtype).itemsize
                         for s in segs)
                     + _pad_lanes(d_total) * jnp.dtype(out_dtype).itemsize)
    tb_max = budget // (2 * max(1, bytes_per_row))   # x2: double-buffered
    tb = min(tb_max, B, max_rows)
    tb = (tb // sub) * sub
    return tb, sub


# ---------------------------------------------------------------------------
# Public entry point (JAX/Pallas equivalent of TensorDictConcatenateEncoder).
# ---------------------------------------------------------------------------
def tensordict_concatenate_encoder(x: dict) -> jax.Array:
    flats = [_flatten_to_2d(v) for v in x.values()]
    if not flats:
        raise ValueError("empty input dict")

    B = flats[0].shape[0]
    # TODO(synk): jnp.result_type may diverge from torch type-promotion for
    # exotic mixed int/bool dicts; identical for the float/int cases used here.
    out_dtype = jnp.result_type(*[f.dtype for f in flats])
    D_total = sum(f.shape[1] for f in flats)

    # Same-dtype fast path: nothing to fuse (no cast) -> pure HBM copy; XLA's
    # native concatenate hits the copy roofline without a VMEM round trip or
    # grid-step overhead.
    if all(f.dtype == out_dtype for f in flats):
        if len(flats) == 1:
            return flats[0]
        return jnp.concatenate(flats, axis=1)

    # Tiny-batch fast path: below one sublane tile the fixed pallas_call
    # overhead and wasted vreg width dominate; XLA's native concat wins.
    min_item = min([jnp.dtype(f.dtype).itemsize for f in flats]
                   + [jnp.dtype(out_dtype).itemsize])
    sublane = max(8, 32 // min_item)
    if B < sublane:
        return jnp.concatenate([f.astype(out_dtype) for f in flats], axis=1)

    # Pre-merge consecutive narrow segments (lane-density of the output stores).
    segs = _group_segments(flats, out_dtype)
    if len(segs) == 1:
        return segs[0].astype(out_dtype)

    vmem_budget, vmem_limit, max_rows = _vmem_params()
    tb, sub = _choose_batch_tile(B, segs, out_dtype, vmem_budget, max_rows)
    if tb < sub:
        # A single (lane-padded) row of all segments blows the VMEM budget;
        # fall back to XLA's copy rather than risk a Mosaic VMEM overflow.
        return jnp.concatenate([f.astype(out_dtype) for f in flats], axis=1)

    # Are all segment output column offsets 128-lane aligned?
    aligned, off = True, 0
    for s in segs:
        if off % _LANE != 0:
            aligned = False
        off += s.shape[1]

    grid = (pl.cdiv(B, tb),)
    in_specs = [pl.BlockSpec((tb, s.shape[1]), lambda i: (i, 0)) for s in segs]
    out_specs = pl.BlockSpec((tb, D_total), lambda i: (i, 0))
    out_shape = jax.ShapeDtypeStruct((B, D_total), out_dtype)

    # Aligned layouts: per-segment unmasked stores.  Misaligned layouts: fused
    # single-store kernel first (lane-dense writeback), with the per-segment
    # kernel as a functionally identical fallback.
    kernel_variants = ([_concat_store_kernel] if aligned
                       else [_concat_fused_kernel, _concat_store_kernel])
    # Explicit cross-TC sharding of the batch tiles (v7x: 2 TensorCores);
    # fall back to plain PARALLEL on generations/Mosaic versions that reject it.
    sem_prefs = [s for s in (getattr(pltpu, "CORE_PARALLEL", None),
                             getattr(pltpu, "PARALLEL", "parallel"))
                 if s is not None]

    last_err = None
    for kbody in kernel_variants:
        for sem in sem_prefs:
            try:
                return pl.pallas_call(
                    kbody,
                    out_shape=out_shape,
                    grid=grid,
                    in_specs=in_specs,
                    out_specs=out_specs,
                    compiler_params=pltpu.CompilerParams(
                        dimension_semantics=(sem,),
                        vmem_limit_bytes=vmem_limit,
                    ),
                )(*segs)
            except Exception as e:  # graceful degradation across generations
                last_err = e
    raise last_err


# ---------------------------------------------------------------------------
# Self-test.
# ---------------------------------------------------------------------------
if __name__ == "__main__":
    key = jax.random.PRNGKey(0)
    k_obs, k_state, k_rew = jax.random.split(key, 3)

    # B=24 is NOT a multiple of the 16-row batch tile -> exercises the partial
    # final output tile (masked OOB rows).
    B = 24
    x = {
        "obs": jax.random.normal(k_obs, (B, 4, 8, 8), dtype=jnp.bfloat16),   # 4D -> 256 cols
        "state": jax.random.normal(k_state, (B, 32), dtype=jnp.float32),     # 2D -> 32 cols
        "reward": jax.random.normal(k_rew, (B,), dtype=jnp.float32),         # 1D -> 1 col
    }

    out = jax.block_until_ready(tensordict_concatenate_encoder(x))
    ref = jnp.concatenate(
        [_flatten_to_2d(v).astype(out.dtype) for v in x.values()], axis=1)
    assert out.shape == (B, 4 * 8 * 8 + 32 + 1), out.shape
    assert out.dtype == jnp.float32, out.dtype
    assert jnp.array_equal(out, ref), "mismatch (aligned per-segment path)"

    # Misaligned dict order (narrow segment before a wide one) -> fused
    # single-store kernel path.
    x_mis = {
        "state": jax.random.normal(k_state, (B, 40), dtype=jnp.float32),
        "obs": jax.random.normal(k_obs, (B, 4, 8, 8), dtype=jnp.bfloat16),
    }
    out_mis = jax.block_until_ready(tensordict_concatenate_encoder(x_mis))
    ref_mis = jnp.concatenate(
        [_flatten_to_2d(v).astype(out_mis.dtype) for v in x_mis.values()], axis=1)
    assert out_mis.shape == (B, 40 + 256), out_mis.shape
    assert jnp.array_equal(out_mis, ref_mis), "mismatch (misaligned fused path)"

    # Tiny-batch fast path (B=2).
    x_small = {k: v[:2] for k, v in x.items()}
    out_small = jax.block_until_ready(tensordict_concatenate_encoder(x_small))
    ref_small = jnp.concatenate(
        [_flatten_to_2d(v).astype(out_small.dtype) for v in x_small.values()], axis=1)
    assert jnp.array_equal(out_small, ref_small), "mismatch (tiny-batch fast path)"

    # Same-dtype fast path (pure copy, no cast to fuse).
    x_same = {
        "a": jax.random.normal(k_obs, (B, 16), dtype=jnp.float32),
        "b": jax.random.normal(k_state, (B, 8), dtype=jnp.float32),
    }
    out_same = jax.block_until_ready(tensordict_concatenate_encoder(x_same))
    ref_same = jnp.concatenate(list(x_same.values()), axis=1)
    assert jnp.array_equal(out_same, ref_same), "mismatch (same-dtype fast path)"

    print("KERNEL_OK")
</pallas_src>

<mosaic_0001>
module attributes {stable_mosaic.version = 11 : i64} {
  func.func @_concat_store_kernel(%arg0: i32, %arg1: memref<16x256xbf16, #tpu.memory_space<vmem>>, %arg2: memref<16x33xf32, #tpu.memory_space<vmem>>, %arg3: memref<16x289xf32, #tpu.memory_space<vmem>>) attributes {dimension_semantics = [#tpu.dimension_semantics<core_parallel>], iteration_bounds = array<i64: 2>, scalar_prefetch = 0 : i64, scratch_operands = 0 : i64, tpu.core_type = #tpu.core_type<tc>, window_params = [{transform_indices = @transform_0, window_bounds = array<i64: 16, 256>}, {transform_indices = @transform_1, window_bounds = array<i64: 16, 33>}, {transform_indices = @transform_2, window_bounds = array<i64: 16, 289>}]} {
    %c0 = arith.constant 0 : index
    %c0_0 = arith.constant 0 : index
    %0 = vector.load %arg1[%c0, %c0_0] : memref<16x256xbf16, #tpu.memory_space<vmem>>, vector<16x256xbf16>
    %1 = arith.extf %0 : vector<16x256xbf16> to vector<16x256xf32>
    %c0_1 = arith.constant 0 : index
    %c0_2 = arith.constant 0 : index
    %2 = vector.load %arg3[%c0_1, %c0_2] : memref<16x289xf32, #tpu.memory_space<vmem>>, vector<16x256xf32>
    tpu.vector_store %arg3[%c0_1, %c0_2], %1 {strides = array<i32>} : memref<16x289xf32, #tpu.memory_space<vmem>>, vector<16x256xf32>,
    %c0_3 = arith.constant 0 : index
    %c0_4 = arith.constant 0 : index
    %3 = vector.load %arg2[%c0_3, %c0_4] : memref<16x33xf32, #tpu.memory_space<vmem>>, vector<16x33xf32>
    %c0_5 = arith.constant 0 : index
    %c256 = arith.constant 256 : index
    %4 = vector.load %arg3[%c0_5, %c256] : memref<16x289xf32, #tpu.memory_space<vmem>>, vector<16x33xf32>
    tpu.vector_store %arg3[%c0_5, %c256], %3 {strides = array<i32>} : memref<16x289xf32, #tpu.memory_space<vmem>>, vector<16x33xf32>,
    return
  }
  func.func @transform_0(%arg0: i32) -> (i32, i32) {
    %c0_i32 = arith.constant 0 : i32
    %c0_i32_0 = arith.constant 0 : i32
    return %arg0, %c0_i32 : i32, i32
  }
  func.func @transform_1(%arg0: i32) -> (i32, i32) {
    %c0_i32 = arith.constant 0 : i32
    %c0_i32_0 = arith.constant 0 : i32
    return %arg0, %c0_i32 : i32, i32
  }
  func.func @transform_2(%arg0: i32) -> (i32, i32) {
    %c0_i32 = arith.constant 0 : i32
    %c0_i32_0 = arith.constant 0 : i32
    return %arg0, %c0_i32 : i32, i32
  }
}

module attributes {stable_mosaic.version = 11 : i64} {
  func.func @_concat_store_kernel(%arg0: i32, %arg1: memref<16x256xbf16, #tpu.memory_space<vmem>>, %arg2: memref<16x33xf32, #tpu.memory_space<vmem>>, %arg3: memref<16x289xf32, #tpu.memory_space<vmem>>) attributes {dimension_semantics = [#tpu.dimension_semantics<parallel>], iteration_bounds = array<i64: 2>, scalar_prefetch = 0 : i64, scratch_operands = 0 : i64, tpu.core_type = #tpu.core_type<tc>, window_params = [{transform_indices = @transform_0, window_bounds = array<i64: 16, 256>}, {transform_indices = @transform_1, window_bounds = array<i64: 16, 33>}, {transform_indices = @transform_2, window_bounds = array<i64: 16, 289>}]} {
    %c0 = arith.constant 0 : index
    %c0_0 = arith.constant 0 : index
    %0 = vector.load %arg1[%c0, %c0_0] : memref<16x256xbf16, #tpu.memory_space<vmem>>, vector<16x256xbf16>
    %1 = arith.extf %0 : vector<16x256xbf16> to vector<16x256xf32>
    %c0_1 = arith.constant 0 : index
    %c0_2 = arith.constant 0 : index
    %2 = vector.load %arg3[%c0_1, %c0_2] : memref<16x289xf32, #tpu.memory_space<vmem>>, vector<16x256xf32>
    tpu.vector_store %arg3[%c0_1, %c0_2], %1 {strides = array<i32>} : memref<16x289xf32, #tpu.memory_space<vmem>>, vector<16x256xf32>,
    %c0_3 = arith.constant 0 : index
    %c0_4 = arith.constant 0 : index
    %3 = vector.load %arg2[%c0_3, %c0_4] : memref<16x33xf32, #tpu.memory_space<vmem>>, vector<16x33xf32>
    %c0_5 = arith.constant 0 : index
    %c256 = arith.constant 256 : index
    %4 = vector.load %arg3[%c0_5, %c256] : memref<16x289xf32, #tpu.memory_space<vmem>>, vector<16x33xf32>
    tpu.vector_store %arg3[%c0_5, %c256], %3 {strides = array<i32>} : memref<16x289xf32, #tpu.memory_space<vmem>>, vector<16x33xf32>,
    return
  }
  func.func @transform_0(%arg0: i32) -> (i32, i32) {
    %c0_i32 = arith.constant 0 : i32
    %c0_i32_0 = arith.constant 0 : i32
    return %arg0, %c0_i32 : i32, i32
  }
  func.func @transform_1(%arg0: i32) -> (i32, i32) {
    %c0_i32 = arith.constant 0 : i32
    %c0_i32_0 = arith.constant 0 : i32
    return %arg0, %c0_i32 : i32, i32
  }
  func.func @transform_2(%arg0: i32) -> (i32, i32) {
    %c0_i32 = arith.constant 0 : i32
    %c0_i32_0 = arith.constant 0 : i32
    return %arg0, %c0_i32 : i32, i32
  }
}

</mosaic_0001>

<llo_original>
// kernel: tpu_custom_call.1
$region0: #{tpu_custom_call.1}
  #allocation0 [shape = 'u32[]', space=smem, size = 0x4, offset = 0x4, fixed_abs, tag = 'smem constant byte address 0x4 - core index']
  #allocation1 [shape = 'u32[144,128]{1,0:T(1,128)}', space=vmem, size = 0x12000, scoped, tag = 'internal scratch']
  %s0 = inlined_call_operand.hbm [shape: bf16[24,256], index: 0, kind: input, shape index: {}]
  %s1 = inlined_call_operand.hbm [shape: f32[24,33], index: 1, kind: input, shape index: {}]
  %s2 = inlined_call_operand.hbm [shape: f32[24,289], index: 2, kind: output, shape index: {}]
  %s3 = sld [smem:[#allocation0]]
  $region49: #{tpu_custom_call.1} parent=0
    _
  %s5 = ssub.s32 1, %s3
  %s6 = scalar_select 0, %s5, %s3
  $region1: #{tpu_custom_call.1} parent=0
    #allocation2 [shape = 'u8[16384]{0}', space=vmem, size = 0x4000, scoped, tag = 'input window, operand 0']
    #allocation3 [shape = 's32[2]{0}', space=sflag, size = 0x8, scoped, tag = 'scoped memory for tpu_custom_call.1']
    #allocation4 [shape = 's32[2]{0}', space=sflag, size = 0x8, scoped, tag = 'scoped memory for tpu_custom_call.1']
    #allocation5 [shape = 'u8[16384]{0}', space=vmem, size = 0x4000, scoped, tag = 'input window, operand 1']
    #allocation6 [shape = 's32[2]{0}', space=sflag, size = 0x8, scoped, tag = 'scoped memory for tpu_custom_call.1']
    #allocation7 [shape = 'u8[49152]{0}', space=vmem, size = 0xc000, scoped, tag = 'output window, operand 0']
    %7 = vsyncpa [#allocation3], 0
    %s8 = scalar_lea.sflag [#allocation3], 1
    %9 = vsyncpa %s8, 0
    %10 = vsyncpa [#allocation6], 0
    %s11 = scalar_lea.sflag [#allocation6], 1
    %12 = vsyncpa %s11, 0
    %13 = vsyncpa [#allocation4], 0
    %s14 = scalar_lea.sflag [#allocation4], 1
    %15 = vsyncpa %s14, 0
    loop: start=0, step=1, limit=4
    $region2: #{tpu_custom_call.1} parent=1 // loop_pre_header
      _
    $region3: #{tpu_custom_call.1} parent=1 // loop_header
      %s17 = sphi 0, %s21
      %p18 = scmp.ge.s32.totalorder %s17, 4
      %s27 = sphi 0, %s29
      %s30 = sphi 0, %s27
      %s31 = sphi 0, %s30
      %s47 = sphi 0, %s31
      %s53 = sphi 0, %s55
      %s56 = sphi 0, %s53
      %s57 = sphi 0, %s56
      %s73 = sphi 0, %s57
      %s79 = sphi 0, %s81
      %s82 = sphi 0, %s79
      %s83 = sphi 0, %s82
      %s99 = sphi 0, %s83
    $region4: #{tpu_custom_call.1} parent=1 // loop_header_branch
      %20 = sbr.rel (%p18) target = $region8
    $region5: #{tpu_custom_call.1} parent=1 // loop_body
      %s22 = ssub.s32 %s17, 1
      %s23 = ssub.s32 %s17, 2
      %s24 = sadd.s32 %s17, 1
      %s25 = ssub.s32 %s17, %s24
      %p26 = scmp.eq.s32.totalorder %s25, 0
      %s28 = sadd.s32 %s27, 1
      %s29 = scalar_select %p26, %s27, %s28
      %p32 = pneg %p26
      %p33 = scmp.eq.s32.totalorder %s17, 1
      %p34 = por %p32, %p33
      %p35 = scmp.ne.s32.totalorder %s27, %s30
      %p36 = scmp.eq.s32.totalorder %s17, 0
      %p37 = por %p35, %p36
      %p38 = scmp.ne.s32.totalorder %s27, %s30
      %p39 = scmp.eq.s32.totalorder %s22, 1
      %p40 = por %p38, %p39
      %p41 = scmp.ne.s32.totalorder %s30, %s31
      %p42 = scmp.eq.s32.totalorder %s22, 0
      %p43 = por %p41, %p42
      %p44 = scmp.ne.s32.totalorder %s30, %s31
      %p45 = scmp.eq.s32.totalorder %s23, 1
      %p46 = por %p44, %p45
      %p48 = scmp.ne.s32.totalorder %s31, %s47
      %p49 = scmp.eq.s32.totalorder %s23, 0
      %p50 = por %p48, %p49
      %s51 = ssub.s32 %s17, %s24
      %p52 = scmp.eq.s32.totalorder %s51, 0
      %s54 = sadd.s32 %s53, 1
      %s55 = scalar_select %p52, %s53, %s54
      %p58 = pneg %p52
      %p59 = scmp.eq.s32.totalorder %s17, 1
      %p60 = por %p58, %p59
      %p61 = scmp.ne.s32.totalorder %s53, %s56
      %p62 = scmp.eq.s32.totalorder %s17, 0
      %p63 = por %p61, %p62
      %p64 = scmp.ne.s32.totalorder %s53, %s56
      %p65 = scmp.eq.s32.totalorder %s22, 1
      %p66 = por %p64, %p65
      %p67 = scmp.ne.s32.totalorder %s56, %s57
      %p68 = scmp.eq.s32.totalorder %s22, 0
      %p69 = por %p67, %p68
      %p70 = scmp.ne.s32.totalorder %s56, %s57
      %p71 = scmp.eq.s32.totalorder %s23, 1
      %p72 = por %p70, %p71
      %p74 = scmp.ne.s32.totalorder %s57, %s73
      %p75 = scmp.eq.s32.totalorder %s23, 0
      %p76 = por %p74, %p75
      %s77 = ssub.s32 %s17, %s24
      %p78 = scmp.eq.s32.totalorder %s77, 0
      %s80 = sadd.s32 %s79, 1
      %s81 = scalar_select %p78, %s79, %s80
      %p84 = pneg %p78
      %p85 = scmp.eq.s32.totalorder %s17, 1
      %p86 = por %p84, %p85
      %p87 = scmp.ne.s32.totalorder %s79, %s82
      %p88 = scmp.eq.s32.totalorder %s17, 0
      %p89 = por %p87, %p88
      %p90 = scmp.ne.s32.totalorder %s79, %s82
      %p91 = scmp.eq.s32.totalorder %s22, 1
      %p92 = por %p90, %p91
      %p93 = scmp.ne.s32.totalorder %s82, %s83
      %p94 = scmp.eq.s32.totalorder %s22, 0
      %p95 = por %p93, %p94
      %p96 = scmp.ne.s32.totalorder %s82, %s83
      %p97 = scmp.eq.s32.totalorder %s23, 1
      %p98 = por %p96, %p97
      %p100 = scmp.ne.s32.totalorder %s83, %s99
      %p101 = scmp.eq.s32.totalorder %s23, 0
      %p102 = por %p100, %p101
      %p103 = scmp.le.s32.totalorder 1, %s17
      %p104 = scmp.lt.s32.totalorder %s17, 3
      %p105 = pnand %p103, %p104
      %p106 = pneg %p105
      // Predicated region
      $region9: #{tpu_custom_call.1} parent=5 // pred_check
        _
      $region10: #{tpu_custom_call.1} parent=5 // pred_check_branch
        %108 = sbr.rel (%p105) target = $region12
      $region11: #{tpu_custom_call.1} parent=5 // pred_region
        %s109 = ssub.s32 %s17, 1
      $region12: #{tpu_custom_call.1} parent=5 // pred_fallthru
        _
      %p110 = scmp.lt.s32.totalorder %s17, 2
      // Predicated region
      $region13: #{tpu_custom_call.1} parent=5 // pred_check
        %p111 = pneg %p110
      $region14: #{tpu_custom_call.1} parent=5 // pred_check_branch
        %113 = sbr.rel (%p111) target = $region16
      $region15: #{tpu_custom_call.1} parent=5 // pred_region
        // Predicated region
        $region17: #{tpu_custom_call.1} parent=15 // pred_check
          %p114 = pneg %p37
        $region18: #{tpu_custom_call.1} parent=15 // pred_check_branch
          %116 = sbr.rel (%p114) target = $region20
        $region19: #{tpu_custom_call.1} parent=15 // pred_region
          %s117 = sand.u32 %s27, 1
          %s118 = scalar_lea.sflag [#allocation3], %s117
          %s119 = sand.u32 %s27, 1
          %s120 = smul.addr %s119, 16
          %s121 = scalar_lea.vmem [#allocation2], %s120
          %s122 = smul.u32 2, %s17
          %s123 = ssub.s32 3, %s122
          %p124 = scmp.lt.s32.totalorder %s123, 2
          %s125 = scalar_select %p124, %s123, 2
          %s126 = smul.u32 64, %s125
          %s127 = smul.u32 %s126, 2
          %s129 = ssub.s32 256, %s127
          %130 = vsyncadd %s118, %s129
          %p131 = scmp.ne.s32.totalorder 0, %s127
          %s132 = smul.addr %s122, 2
          %s133 = smul.addr %s132, 64
          %s134 = scalar_lea.hbm %s0, %s133
          %s135 = smul.u32 8, %s125
          %s136 = sshll.u32 %s121, 4
          %s137 = int_to_ptr.vmem [resolvable:$true] %s136
          %s138 = sshll.u32 %s135, 4
          %142 = dma.hbm_to_vmem [thread:$0]  (%p131), %s134, %s138, %s137, %s118, 128, 128, 8
        $region20: #{tpu_custom_call.1} parent=15 // pred_fallthru
          _
        // Predicated region
        $region21: #{tpu_custom_call.1} parent=15 // pred_check
          %p143 = pneg %p63
        $region22: #{tpu_custom_call.1} parent=15 // pred_check_branch
          %145 = sbr.rel (%p143) target = $region24
        $region23: #{tpu_custom_call.1} parent=15 // pred_region
          %s146 = sand.u32 %s53, 1
          %s147 = scalar_lea.sflag [#allocation6], %s146
          %s148 = sand.u32 %s53, 1
          %s149 = smul.addr %s148, 16
          %s150 = scalar_lea.vmem [#allocation5], %s149
          %s151 = smul.u32 2, %s17
          %s152 = ssub.s32 3, %s151
          %p153 = scmp.lt.s32.totalorder %s152, 2
          %s154 = scalar_select %p153, %s152, 2
          %s155 = smul.u32 128, %s154
          %s157 = ssub.s32 256, %s155
          %158 = vsyncadd %s147, %s157
          %p159 = scmp.ne.s32.totalorder 0, %s155
          %s160 = smul.addr %s151, 128
          %s161 = scalar_lea.hbm %s1, %s160
          %s162 = smul.u32 8, %s154
          %s163 = sshll.u32 %s150, 4
          %s164 = int_to_ptr.vmem [resolvable:$true] %s163
          %s165 = sshll.u32 %s162, 4
          %169 = dma.hbm_to_vmem [thread:$0]  (%p159), %s161, %s165, %s164, %s147, 128, 128, 8
        $region24: #{tpu_custom_call.1} parent=15 // pred_fallthru
          _
      $region16: #{tpu_custom_call.1} parent=5 // pred_fallthru
        _
      %p170 = scmp.le.s32.totalorder 1, %s17
      %p171 = scmp.lt.s32.totalorder %s17, 3
      %p172 = pnand %p170, %p171
      %p173 = pneg %p172
      // Predicated region
      $region25: #{tpu_custom_call.1} parent=5 // pred_check
        _
      $region26: #{tpu_custom_call.1} parent=5 // pred_check_branch
        %175 = sbr.rel (%p172) target = $region28
      $region27: #{tpu_custom_call.1} parent=5 // pred_region
        %s176 = ssub.s32 %s17, 1
        %s177 = sand.u32 %s30, 1
        %s178 = scalar_lea.sflag [#allocation3], %s177
        %s179 = sand.u32 %s30, 1
        %s180 = smul.addr %s179, 16
        %s181 = scalar_lea.vmem [#allocation2], %s180
        // Predicated region
        $region29: #{tpu_custom_call.1} parent=27 // pred_check
          %p182 = pneg %p43
        $region30: #{tpu_custom_call.1} parent=27 // pred_check_branch
          %184 = sbr.rel (%p182) target = $region32
        $region31: #{tpu_custom_call.1} parent=27 // pred_region
          %185 = dma.done %s178, 256
        $region32: #{tpu_custom_call.1} parent=27 // pred_fallthru
          _
        %s186 = sand.u32 %s56, 1
        %s187 = scalar_lea.sflag [#allocation6], %s186
        %s188 = sand.u32 %s56, 1
        %s189 = smul.addr %s188, 16
        %s190 = scalar_lea.vmem [#allocation5], %s189
        // Predicated region
        $region33: #{tpu_custom_call.1} parent=27 // pred_check
          %p191 = pneg %p69
        $region34: #{tpu_custom_call.1} parent=27 // pred_check_branch
          %193 = sbr.rel (%p191) target = $region36
        $region35: #{tpu_custom_call.1} parent=27 // pred_region
          %194 = dma.done %s187, 256
        $region36: #{tpu_custom_call.1} parent=27 // pred_fallthru
          _
        %s195 = sand.u32 %s30, 1
        %s196 = scalar_lea.sflag [#allocation3], %s195
        %s197 = sand.u32 %s30, 1
        %s198 = smul.addr %s197, 16
        %s199 = scalar_lea.vmem [#allocation2], %s198
        %p200 = pneg %p43
        %p201 = pneg %p40
        %s202 = sand.u32 %s56, 1
        %s203 = scalar_lea.sflag [#allocation6], %s202
        %s204 = sand.u32 %s56, 1
        %s205 = smul.addr %s204, 16
        %s206 = scalar_lea.vmem [#allocation5], %s205
        %p207 = pneg %p69
        %p208 = pneg %p66
        %p209 = pneg %p95
        %p210 = pneg %p92
        %s211 = sand.u32 %s82, 1
        %s212 = scalar_lea.sflag [#allocation4], %s211
        %s213 = sand.u32 %s82, 1
        %s214 = smul.addr %s213, 48
        %s215 = scalar_lea.vmem [#allocation7], %s214
        %s216 = smul.u32 2, %s22
        %s217 = ssub.s32 3, %s216
        %p218 = scmp.lt.s32.totalorder %s217, 2
        %s219 = scalar_select %p218, %s217, 2
        %s220 = smul.u32 64, %s219
        %s221 = smul.u32 %s220, 2
        %s222 = smul.u32 2, %s22
        %s223 = ssub.s32 3, %s222
        %p224 = scmp.lt.s32.totalorder %s223, 2
        %s225 = scalar_select %p224, %s223, 2
        %s226 = smul.u32 128, %s225
        %s227 = smul.u32 2, %s22
        %s228 = ssub.s32 3, %s227
        %p229 = scmp.lt.s32.totalorder %s228, 2
        %s230 = scalar_select %p229, %s228, 2
        %s231 = smul.u32 128, %s230
        %s232 = smul.u32 %s231, 3
        %v233 = vld [vmem:[%s181] sm:$0xff]
        %v234 = vld [vmem:[%s181 + $0x8] sm:$0xff]
        %v235 = vunpack.c.l.bf16 %v233
        %v236 = vunpack.c.h.bf16 %v233
        %v237 = vunpack.c.l.bf16 %v234
        %v238 = vunpack.c.h.bf16 %v234
        %239 = vst [vmem:[%s215] sm:$0xff] %v235
        %240 = vst [vmem:[%s215 + $0x8] sm:$0xff] %v236
        %241 = vst [vmem:[%s215 + $0x18] sm:$0xff] %v237
        %242 = vst [vmem:[%s215 + $0x20] sm:$0xff] %v238
        %v243 = vld [vmem:[%s190] sm:$0xff]
        %v244 = vld [vmem:[%s190 + $0x8] sm:$0xff]
        %vm245 = vcmask 269312
        %246 = vst.msk [vmem:[%s215 + $0x10] sm:$0xff] %vm245, %v243
        %247 = vst.msk [vmem:[%s215 + $0x28] sm:$0xff] %vm245, %v244
        %s248 = sand.u32 %s82, 1
        %s249 = scalar_lea.sflag [#allocation4], %s248
        %s250 = sand.u32 %s82, 1
        %s251 = smul.addr %s250, 48
        %s252 = scalar_lea.vmem [#allocation7], %s251
        // Predicated region
        $region37: #{tpu_custom_call.1} parent=27 // pred_check
          %p253 = pneg %p92
        $region38: #{tpu_custom_call.1} parent=27 // pred_check_branch
          %255 = sbr.rel (%p253) target = $region40
        $region39: #{tpu_custom_call.1} parent=27 // pred_region
          %s256 = smul.u32 2, %s22
          %s257 = ssub.s32 3, %s256
          %p258 = scmp.lt.s32.totalorder %s257, 2
          %s259 = scalar_select %p258, %s257, 2
          %s260 = smul.u32 128, %s259
          %s261 = smul.u32 %s260, 3
          %s263 = ssub.s32 768, %s261
          %264 = vsyncadd %s249, %s263
          %p265 = scmp.ne.s32.totalorder 0, %s261
          %s266 = smul.addr %s256, 3
          %s267 = smul.addr %s266, 128
          %s268 = scalar_lea.hbm %s2, %s267
          %s269 = smul.u32 24, %s259
          %s270 = sshll.u32 %s252, 4
          %s271 = int_to_ptr.vmem [resolvable:$true] %s270
          %s272 = sshll.u32 %s269, 4
          %276 = dma.vmem_to_hbm [thread:$0]  (%p265), %s271, %s272, %s268, %s249, 384, 384, 24
        $region40: #{tpu_custom_call.1} parent=27 // pred_fallthru
          _
      $region28: #{tpu_custom_call.1} parent=5 // pred_fallthru
        _
      %p277 = scmp.le.s32.totalorder 2, %s17
      // Predicated region
      $region41: #{tpu_custom_call.1} parent=5 // pred_check
        %p278 = pneg %p277
      $region42: #{tpu_custom_call.1} parent=5 // pred_check_branch
        %280 = sbr.rel (%p278) target = $region44
      $region43: #{tpu_custom_call.1} parent=5 // pred_region
        %s281 = ssub.s32 %s17, 2
        // Predicated region
        $region45: #{tpu_custom_call.1} parent=43 // pred_check
          %p282 = pneg %p98
        $region46: #{tpu_custom_call.1} parent=43 // pred_check_branch
          %284 = sbr.rel (%p282) target = $region48
        $region47: #{tpu_custom_call.1} parent=43 // pred_region
          %s285 = sand.u32 %s83, 1
          %s286 = scalar_lea.sflag [#allocation4], %s285
          %s287 = sand.u32 %s83, 1
          %s288 = smul.addr %s287, 48
          %s289 = scalar_lea.vmem [#allocation7], %s288
          %290 = dma.done %s286, 768
        $region48: #{tpu_custom_call.1} parent=43 // pred_fallthru
          _
      $region44: #{tpu_custom_call.1} parent=5 // pred_fallthru
        _
    $region6: #{tpu_custom_call.1} parent=1 // loop_footer
      %s21 = sadd.s32 1, %s17
    $region7: #{tpu_custom_call.1} parent=1 // loop_footer_branch
      %16 = sbr.rel target = $region3
    $region8: #{tpu_custom_call.1} parent=1 // loop_exit
      _
    %291 = vsyncpa [#allocation3], 1
    %s292 = scalar_lea.sflag [#allocation3], 1
    %293 = vsyncpa %s292, 1
    %294 = vsyncpa [#allocation6], 1
    %s295 = scalar_lea.sflag [#allocation6], 1
    %296 = vsyncpa %s295, 1
    %297 = vsyncpa [#allocation4], 1
    %s298 = scalar_lea.sflag [#allocation4], 1
    %299 = vsyncpa %s298, 1

</llo_original>
